<compile_context>
chip_gen: v5e
topology: v5e:2x2
jax: 0.10.0
libtpu: 0.0.40
codegen_flags: <defaults>
</compile_context>

<pallas_src>
import math

import jax
import jax.numpy as jnp
from jax import lax
from jax.experimental import pallas as pl
from jax.experimental.pallas import tpu as pltpu


def _round_up(x, m):
    return ((x + m - 1) // m) * m


def _default_compute_dtype():
    """bf16 tanh/activations on chips with a bf16 VPU/EUP (v6e, v7x); else f32."""
    try:
        kind = jax.devices()[0].device_kind.lower()
    except Exception:
        return jnp.float32
    if "v6" in kind or "v7" in kind or "7x" in kind:
        return jnp.bfloat16
    return jnp.float32  # v5e/v5p/v4/...: no bf16 VPU/EUP path, bf16 buys nothing


def _choose_tiles(B, max_tile=32768):
    """Pick (batch tile, in-kernel lane chunk). Tile is a multiple of 128 lanes."""
    b128 = _round_up(B, 128)
    tile = min(max_tile, b128)
    if b128 >= 256:
        # Keep >=2 grid steps whenever possible so a "parallel" batch axis can
        # use both v7x TensorCores (costs one extra ~0.35us step elsewhere).
        tile = min(tile, _round_up(pl.cdiv(b128, 2), 128))
    if tile > 512:
        tile = (tile // 512) * 512  # multiple of the in-kernel chunk size
    chunk = min(512, tile)
    return tile, chunk


def _make_kernel(n_chunks, chunk, compute_dtype):
    """Feature-major fused MLP over one (4, tile_b) batch tile."""

    def kernel(xT_ref, w1_ref, b1_ref, w2_ref, b2_ref, w3_ref, b3_ref, o_ref):
        # Weights/biases are tiny and VMEM-resident (constant index_map).
        w1 = w1_ref[...]
        b1 = b1_ref[...]
        w2 = w2_ref[...]
        b2 = b2_ref[...]
        w3 = w3_ref[...]
        b3 = b3_ref[...]

        def body(c, carry):
            off = pl.multiple_of(c * chunk, 128)
            xs = xT_ref[:, pl.ds(off, chunk)].astype(compute_dtype)      # (4, chunk)
            pre1 = jnp.dot(w1, xs, preferred_element_type=jnp.float32) + b1
            h1 = jnp.tanh(pre1.astype(compute_dtype))                    # (32, chunk)
            pre2 = jnp.dot(w2, h1, preferred_element_type=jnp.float32) + b2
            h2 = jnp.tanh(pre2.astype(compute_dtype))                    # (32, chunk)
            out = jnp.dot(w3, h2, preferred_element_type=jnp.float32) + b3
            o_ref[:, pl.ds(off, chunk)] = out.astype(o_ref.dtype)        # (6, chunk)
            return carry

        lax.fori_loop(0, n_chunks, body, 0, unroll=(n_chunks <= 8))

    return kernel


def fcnn_forward_feature_major(xT, params, *, compute_dtype=None, max_tile=32768):
    """Performance path. xT: (4, B) feature-major input -> (6, B) output.

    Batch lives on the lane axis end-to-end: lane-dense loads/stores and no
    wrapper-level transpose HBM passes.
    """
    Din, B = xT.shape
    assert Din == 4
    if compute_dtype is None:
        compute_dtype = _default_compute_dtype()

    w1, b1 = params["w1"], params["b1"]   # (32, 4),  (32, 1)
    w2, b2 = params["w2"], params["b2"]   # (32, 32), (32, 1)
    w3, b3 = params["w3"], params["b3"]   # (6, 32),  (6, 1)
    Dout = w3.shape[0]

    # Matmul operands in the compute dtype; biases + accumulation stay f32.
    w1c = w1.astype(compute_dtype)
    w2c = w2.astype(compute_dtype)
    w3c = w3.astype(compute_dtype)

    tile_b, chunk = _choose_tiles(B, max_tile)
    n_chunks = tile_b // chunk
    grid = (pl.cdiv(B, tile_b),)

    def x_map(i):
        return (0, i)

    def const_map(i):
        return (0, 0)

    flops = 2 * B * (Din * 32 + 32 * 32 + 32 * Dout)
    transcendentals = B * 64  # two tanh layers of width 32
    bytes_accessed = 4 * (
        xT.size + B * Dout
        + w1.size + b1.size + w2.size + b2.size + w3.size + b3.size
    )

    outT = pl.pallas_call(
        _make_kernel(n_chunks, chunk, compute_dtype),
        out_shape=jax.ShapeDtypeStruct((Dout, B), jnp.float32),
        grid_spec=pltpu.PrefetchScalarGridSpec(
            num_scalar_prefetch=0,
            grid=grid,
            in_specs=[
                pl.BlockSpec((Din, tile_b), x_map),   # lane-dense (4, Bt) x tile
                pl.BlockSpec(w1c.shape, const_map),   # weights/biases VMEM-resident
                pl.BlockSpec(b1.shape, const_map),
                pl.BlockSpec(w2c.shape, const_map),
                pl.BlockSpec(b2.shape, const_map),
                pl.BlockSpec(w3c.shape, const_map),
                pl.BlockSpec(b3.shape, const_map),
            ],
            out_specs=pl.BlockSpec((Dout, tile_b), x_map),  # lane-dense (6, Bt)
        ),
        compiler_params=pltpu.CompilerParams(
            dimension_semantics=("parallel",),     # shard batch over v7x's 2 TCs
            vmem_limit_bytes=48 * 1024 * 1024,     # above v5e's 16MiB scoped default,
                                                   # below v7x's 64MiB physical VMEM
        ),
        cost_estimate=pl.CostEstimate(
            flops=flops,
            transcendentals=transcendentals,
            bytes_accessed=bytes_accessed,
        ),
    )(xT, w1c, b1, w2c, b2, w3c, b3)
    return outT


def fcnn_forward(x, params, *, compute_dtype=None, max_tile=32768):
    """Module-semantics wrapper: x (B, 4) -> (B, 6).

    NOTE: the x.T / out.T here are separate XLA HBM passes (~2x the kernel's own
    HBM traffic). Latency-sensitive callers should produce/consume feature-major
    layout and call fcnn_forward_feature_major directly.
    """
    outT = fcnn_forward_feature_major(
        x.T, params, compute_dtype=compute_dtype, max_tile=max_tile
    )
    return outT.T


def init_params(key):
    """Deterministic init mirroring nn.Linear's U(-1/sqrt(fan_in), 1/sqrt(fan_in)).

    Weights in PyTorch's (out, in) layout; biases stored (out, 1) so the kernel's
    feature-major bias add broadcasts along lanes for free.
    """
    def linear(key, fan_in, fan_out):
        kw, kb = jax.random.split(key)
        bound = 1.0 / math.sqrt(fan_in)
        w = jax.random.uniform(kw, (fan_out, fan_in), jnp.float32, -bound, bound)
        b = jax.random.uniform(kb, (fan_out, 1), jnp.float32, -bound, bound)
        return w, b

    k1, k2, k3 = jax.random.split(key, 3)
    w1, b1 = linear(k1, 4, 32)
    w2, b2 = linear(k2, 32, 32)
    w3, b3 = linear(k3, 32, 6)
    return {"w1": w1, "b1": b1, "w2": w2, "b2": b2, "w3": w3, "b3": b3}


def fcnn_reference(x, p):
    """Pure-JAX f32 reference, batch-major like the PyTorch module: x @ W.T + b."""
    h1 = jnp.tanh(x @ p["w1"].T + p["b1"].T)
    h2 = jnp.tanh(h1 @ p["w2"].T + p["b2"].T)
    return h2 @ p["w3"].T + p["b3"].T


if __name__ == "__main__":
    key = jax.random.PRNGKey(0)
    kp, kx1, kx2 = jax.random.split(key, 3)
    params = init_params(kp)

    # 1) Small batch, forced f32 compute: tight check of exact module semantics.
    B1 = 16
    x1 = jax.random.normal(kx1, (B1, 4), jnp.float32)
    out1 = jax.block_until_ready(fcnn_forward(x1, params, compute_dtype=jnp.float32))
    ref1 = fcnn_reference(x1, params)
    assert out1.shape == (B1, 6)
    assert jnp.allclose(out1, ref1, atol=1e-5, rtol=1e-5), "f32 mismatch vs reference"

    # 2) Ragged batch (not a multiple of 128 / tile, >=2 grid steps), zero-transpose
    #    feature-major path with the chip-default compute dtype (bf16 on v6e/v7x).
    B2 = 300
    x2T = jax.random.normal(kx2, (4, B2), jnp.float32)  # producer emits feature-major
    out2T = jax.block_until_ready(fcnn_forward_feature_major(x2T, params))
    ref2 = fcnn_reference(x2T.T, params)
    assert out2T.shape == (6, B2)
    tol = 1e-5 if _default_compute_dtype() == jnp.float32 else 5e-2
    assert jnp.allclose(out2T.T, ref2, atol=tol, rtol=tol), "auto-dtype mismatch vs reference"

    print("KERNEL_OK")
</pallas_src>

<mosaic_0001>
module attributes {stable_mosaic.version = 11 : i64} {
  func.func @kernel(%arg0: i32, %arg1: memref<4x128xf32, #tpu.memory_space<vmem>>, %arg2: memref<32x4xf32, #tpu.memory_space<vmem>>, %arg3: memref<32x1xf32, #tpu.memory_space<vmem>>, %arg4: memref<32x32xf32, #tpu.memory_space<vmem>>, %arg5: memref<32x1xf32, #tpu.memory_space<vmem>>, %arg6: memref<6x32xf32, #tpu.memory_space<vmem>>, %arg7: memref<6x1xf32, #tpu.memory_space<vmem>>, %arg8: memref<6x128xf32, #tpu.memory_space<vmem>>) attributes {dimension_semantics = [#tpu.dimension_semantics<parallel>], iteration_bounds = array<i64: 1>, scalar_prefetch = 0 : i64, scratch_operands = 0 : i64, tpu.core_type = #tpu.core_type<tc>, window_params = [{transform_indices = @transform_0, window_bounds = array<i64: 4, 128>}, {pipeline_mode = #tpu.pipeline_mode<synchronous>, transform_indices = @transform_1, window_bounds = array<i64: 32, 4>}, {pipeline_mode = #tpu.pipeline_mode<synchronous>, transform_indices = @transform_2, window_bounds = array<i64: 32, 1>}, {pipeline_mode = #tpu.pipeline_mode<synchronous>, transform_indices = @transform_3, window_bounds = array<i64: 32, 32>}, {pipeline_mode = #tpu.pipeline_mode<synchronous>, transform_indices = @transform_4, window_bounds = array<i64: 32, 1>}, {pipeline_mode = #tpu.pipeline_mode<synchronous>, transform_indices = @transform_5, window_bounds = array<i64: 6, 32>}, {pipeline_mode = #tpu.pipeline_mode<synchronous>, transform_indices = @transform_6, window_bounds = array<i64: 6, 1>}, {transform_indices = @transform_7, window_bounds = array<i64: 6, 128>}]} {
    %c0 = arith.constant 0 : index
    %c0_0 = arith.constant 0 : index
    %0 = vector.load %arg2[%c0, %c0_0] : memref<32x4xf32, #tpu.memory_space<vmem>>, vector<32x4xf32>
    %c0_1 = arith.constant 0 : index
    %c0_2 = arith.constant 0 : index
    %1 = vector.load %arg3[%c0_1, %c0_2] : memref<32x1xf32, #tpu.memory_space<vmem>>, vector<32x1xf32>
    %c0_3 = arith.constant 0 : index
    %c0_4 = arith.constant 0 : index
    %2 = vector.load %arg4[%c0_3, %c0_4] : memref<32x32xf32, #tpu.memory_space<vmem>>, vector<32x32xf32>
    %c0_5 = arith.constant 0 : index
    %c0_6 = arith.constant 0 : index
    %3 = vector.load %arg5[%c0_5, %c0_6] : memref<32x1xf32, #tpu.memory_space<vmem>>, vector<32x1xf32>
    %c0_7 = arith.constant 0 : index
    %c0_8 = arith.constant 0 : index
    %4 = vector.load %arg6[%c0_7, %c0_8] : memref<6x32xf32, #tpu.memory_space<vmem>>, vector<6x32xf32>
    %c0_9 = arith.constant 0 : index
    %c0_10 = arith.constant 0 : index
    %5 = vector.load %arg7[%c0_9, %c0_10] : memref<6x1xf32, #tpu.memory_space<vmem>>, vector<6x1xf32>
    %c0_i32 = arith.constant 0 : i32
    %c128_i32 = arith.constant 128 : i32
    %6 = arith.muli %c0_i32, %c128_i32 : i32
    %7 = tpu.assume_multiple %6, 128 : i32
    %c0_11 = arith.constant 0 : index
    %8 = arith.index_cast %7 : i32 to index
    %9 = vector.load %arg1[%c0_11, %8] : memref<4x128xf32, #tpu.memory_space<vmem>>, vector<4x128xf32>
    %cst = arith.constant dense<0.000000e+00> : vector<32x128xf32>
    %10 = tpu.matmul %0, %9, %cst {dimension_numbers = #tpu.dot_dimension_numbers<[1], [0], [0], [1], [0, 0, 1, 1], [], []>} : vector<32x4xf32>, vector<4x128xf32>, vector<32x128xf32> -> vector<32x128xf32>
    %11 = vector.broadcast %1 : vector<32x1xf32> to vector<32x128xf32>
    %12 = arith.addf %10, %11 : vector<32x128xf32>
    %13 = math.tanh %12 : vector<32x128xf32>
    %cst_12 = arith.constant dense<0.000000e+00> : vector<32x128xf32>
    %14 = tpu.matmul %2, %13, %cst_12 {dimension_numbers = #tpu.dot_dimension_numbers<[1], [0], [0], [1], [0, 0, 1, 1], [], []>} : vector<32x32xf32>, vector<32x128xf32>, vector<32x128xf32> -> vector<32x128xf32>
    %15 = vector.broadcast %3 : vector<32x1xf32> to vector<32x128xf32>
    %16 = arith.addf %14, %15 : vector<32x128xf32>
    %17 = math.tanh %16 : vector<32x128xf32>
    %cst_13 = arith.constant dense<0.000000e+00> : vector<6x128xf32>
    %18 = tpu.matmul %4, %17, %cst_13 {dimension_numbers = #tpu.dot_dimension_numbers<[1], [0], [0], [1], [0, 0, 1, 1], [], []>} : vector<6x32xf32>, vector<32x128xf32>, vector<6x128xf32> -> vector<6x128xf32>
    %19 = vector.broadcast %5 : vector<6x1xf32> to vector<6x128xf32>
    %20 = arith.addf %18, %19 : vector<6x128xf32>
    %c0_14 = arith.constant 0 : index
    %21 = arith.index_cast %7 : i32 to index
    %22 = vector.load %arg8[%c0_14, %21] : memref<6x128xf32, #tpu.memory_space<vmem>>, vector<6x128xf32>
    tpu.vector_store %arg8[%c0_14, %21], %20 {strides = array<i32>} : memref<6x128xf32, #tpu.memory_space<vmem>>, vector<6x128xf32>,
    %c1_i32 = arith.constant 1 : i32
    return
  }
  func.func @transform_0(%arg0: i32) -> (i32, i32) {
    %c0_i32 = arith.constant 0 : i32
    %c0_i32_0 = arith.constant 0 : i32
    return %c0_i32, %arg0 : i32, i32
  }
  func.func @transform_1(%arg0: i32) -> (i32, i32) {
    %c0_i32 = arith.constant 0 : i32
    %c0_i32_0 = arith.constant 0 : i32
    %c0_i32_1 = arith.constant 0 : i32
    return %c0_i32, %c0_i32_0 : i32, i32
  }
  func.func @transform_2(%arg0: i32) -> (i32, i32) {
    %c0_i32 = arith.constant 0 : i32
    %c0_i32_0 = arith.constant 0 : i32
    %c0_i32_1 = arith.constant 0 : i32
    return %c0_i32, %c0_i32_0 : i32, i32
  }
  func.func @transform_3(%arg0: i32) -> (i32, i32) {
    %c0_i32 = arith.constant 0 : i32
    %c0_i32_0 = arith.constant 0 : i32
    %c0_i32_1 = arith.constant 0 : i32
    return %c0_i32, %c0_i32_0 : i32, i32
  }
  func.func @transform_4(%arg0: i32) -> (i32, i32) {
    %c0_i32 = arith.constant 0 : i32
    %c0_i32_0 = arith.constant 0 : i32
    %c0_i32_1 = arith.constant 0 : i32
    return %c0_i32, %c0_i32_0 : i32, i32
  }
  func.func @transform_5(%arg0: i32) -> (i32, i32) {
    %c0_i32 = arith.constant 0 : i32
    %c0_i32_0 = arith.constant 0 : i32
    %c0_i32_1 = arith.constant 0 : i32
    return %c0_i32, %c0_i32_0 : i32, i32
  }
  func.func @transform_6(%arg0: i32) -> (i32, i32) {
    %c0_i32 = arith.constant 0 : i32
    %c0_i32_0 = arith.constant 0 : i32
    %c0_i32_1 = arith.constant 0 : i32
    return %c0_i32, %c0_i32_0 : i32, i32
  }
  func.func @transform_7(%arg0: i32) -> (i32, i32) {
    %c0_i32 = arith.constant 0 : i32
    %c0_i32_0 = arith.constant 0 : i32
    return %c0_i32, %arg0 : i32, i32
  }
}

</mosaic_0001>

<llo_original>
// kernel: tpu_custom_call.1
$region0: #{tpu_custom_call.1}
  #allocation0 [shape = 'u32[]', space=smem, size = 0x4, offset = 0x4, fixed_abs, tag = 'smem constant byte address 0x4 - core index']
  #allocation1 [shape = 'u32[72,128]{1,0:T(1,128)}', space=vmem, size = 0x9000, scoped, tag = 'internal scratch']
  %s0 = inlined_call_operand.vmem [shape: f32[4,16], index: 0, kind: input, shape index: {}]
  %s1 = inlined_call_operand.vmem [shape: f32[32,4], index: 1, kind: input, shape index: {}]
  %s2 = inlined_call_operand.vmem [shape: f32[32,1], index: 2, kind: input, shape index: {}]
  %s3 = inlined_call_operand.vmem [shape: f32[32,32], index: 3, kind: input, shape index: {}]
  %s4 = inlined_call_operand.vmem [shape: f32[32,1], index: 4, kind: input, shape index: {}]
  %s5 = inlined_call_operand.vmem [shape: f32[6,32], index: 5, kind: input, shape index: {}]
  %s6 = inlined_call_operand.vmem [shape: f32[6,1], index: 6, kind: input, shape index: {}]
  %s7 = inlined_call_operand.hbm [shape: f32[6,16], index: 7, kind: output, shape index: {}]
  %s8 = sld [smem:[#allocation0]]
  $region38: #{tpu_custom_call.1} parent=0
    _
  %s10 = ssub.s32 1, %s8
  %s11 = scalar_select 0, %s10, %s8
  $region1: #{tpu_custom_call.1} parent=0
    #allocation2 [shape = 'u8[4096]{0}', space=vmem, size = 0x1000, scoped, tag = 'output window, operand 0, single buffered']
    #allocation3 [shape = 's32[1]{0}', space=sflag, size = 0x4, scoped, tag = 'scoped memory for tpu_custom_call.1']
    %12 = vsyncpa [#allocation3], 0
    // Predicated region
    $region2: #{tpu_custom_call.1} parent=1 // pred_check
      _
    $region3: #{tpu_custom_call.1} parent=1 // pred_check_branch
      %14 = sbr.rel (0) target = $region5
    $region4: #{tpu_custom_call.1} parent=1 // pred_region
      _
    $region5: #{tpu_custom_call.1} parent=1 // pred_fallthru
      _
    // Predicated region
    $region6: #{tpu_custom_call.1} parent=1 // pred_check
      _
    $region7: #{tpu_custom_call.1} parent=1 // pred_check_branch
      %16 = sbr.rel (0) target = $region9
    $region8: #{tpu_custom_call.1} parent=1 // pred_region
      _
    $region9: #{tpu_custom_call.1} parent=1 // pred_fallthru
      _
    // Predicated region
    $region10: #{tpu_custom_call.1} parent=1 // pred_check
      _
    $region11: #{tpu_custom_call.1} parent=1 // pred_check_branch
      %18 = sbr.rel (0) target = $region13
    $region12: #{tpu_custom_call.1} parent=1 // pred_region
      _
    $region13: #{tpu_custom_call.1} parent=1 // pred_fallthru
      _
    // Predicated region
    $region14: #{tpu_custom_call.1} parent=1 // pred_check
      _
    $region15: #{tpu_custom_call.1} parent=1 // pred_check_branch
      %20 = sbr.rel (0) target = $region17
    $region16: #{tpu_custom_call.1} parent=1 // pred_region
      _
    $region17: #{tpu_custom_call.1} parent=1 // pred_fallthru
      _
    // Predicated region
    $region18: #{tpu_custom_call.1} parent=1 // pred_check
      _
    $region19: #{tpu_custom_call.1} parent=1 // pred_check_branch
      %22 = sbr.rel (0) target = $region21
    $region20: #{tpu_custom_call.1} parent=1 // pred_region
      _
    $region21: #{tpu_custom_call.1} parent=1 // pred_fallthru
      _
    // Predicated region
    $region22: #{tpu_custom_call.1} parent=1 // pred_check
      _
    $region23: #{tpu_custom_call.1} parent=1 // pred_check_branch
      %24 = sbr.rel (0) target = $region25
    $region24: #{tpu_custom_call.1} parent=1 // pred_region
      _
    $region25: #{tpu_custom_call.1} parent=1 // pred_fallthru
      _
    // Predicated region
    $region26: #{tpu_custom_call.1} parent=1 // pred_check
      _
    $region27: #{tpu_custom_call.1} parent=1 // pred_check_branch
      %26 = sbr.rel (0) target = $region29
    $region28: #{tpu_custom_call.1} parent=1 // pred_region
      _
    $region29: #{tpu_custom_call.1} parent=1 // pred_fallthru
      _
    %v27 = vld [vmem:[%s1] sm:$0xff]
    %v28 = vld [vmem:[%s1 + $0x8] sm:$0xff]
    %v29 = vld [vmem:[%s1 + $0x10] sm:$0xff]
    %v30 = vld [vmem:[%s1 + $0x18] sm:$0xff]
    %v31 = vld [vmem:[%s2] sm:$0xff]
    %v32 = vld [vmem:[%s2 + $0x8] sm:$0xff]
    %v33 = vld [vmem:[%s2 + $0x10] sm:$0xff]
    %v34 = vld [vmem:[%s2 + $0x18] sm:$0xff]
    %v35 = vld [vmem:[%s3] sm:$0xff]
    %v36 = vld [vmem:[%s3 + $0x8] sm:$0xff]
    %v37 = vld [vmem:[%s3 + $0x10] sm:$0xff]
    %v38 = vld [vmem:[%s3 + $0x18] sm:$0xff]
    %v39 = vld [vmem:[%s4] sm:$0xff]
    %v40 = vld [vmem:[%s4 + $0x8] sm:$0xff]
    %v41 = vld [vmem:[%s4 + $0x10] sm:$0xff]
    %v42 = vld [vmem:[%s4 + $0x18] sm:$0xff]
    %v43 = vld [vmem:[%s5] sm:$0x3f]
    %v44 = vld [vmem:[%s6] sm:$0x3f]
    %v45 = vld [vmem:[%s0] sm:$0xf]
    %47 = vset.pattern.permute.xlu0 0
    %48 = vperm.xlu0 %47, %v31
    %v49 = vpop.permute.xlu0 %48
    %52 = vset.pattern.permute.xlu0 0
    %53 = vperm.xlu0 %52, %v32
    %v54 = vpop.permute.xlu0 %53
    %57 = vset.pattern.permute.xlu0 0
    %58 = vperm.xlu0 %57, %v33
    %v59 = vpop.permute.xlu0 %58
    %62 = vset.pattern.permute.xlu0 0
    %63 = vperm.xlu0 %62, %v34
    %v64 = vpop.permute.xlu0 %63
    %vm66 = vcmask 31744
    %v68 = vsel %vm66, %v27, 0
    %v71 = vsel %vm66, %v28, 0
    %v74 = vsel %vm66, %v29, 0
    %v77 = vsel %vm66, %v30, 0
    %vm79 = vcmask 1043456
    %v81 = vsel %vm79, %v45, 0
    %83 = vmatpush.msra.mxu0 0.0
    %84 = vmatpush.msra.mxu0 0.0
    %85 = vmatpush.msra.mxu0 0.0
    %86 = vmatpush.msra.mxu0 0.0
    %87 = vmatpush.msra.mxu0 0.0
    %88 = vmatpush.msra.mxu0 0.0
    %89 = vmatpush.msra.mxu0 0.0
    %90 = vmatpush.msra.mxu0 0.0
    %91 = vmatpush.msra.mxu0 0.0
    %92 = vmatpush.msra.mxu0 0.0
    %93 = vmatpush.msra.mxu0 0.0
    %94 = vmatpush.msra.mxu0 0.0
    %95 = vmatpush.msra.mxu0 0.0
    %96 = vmatpush.msra.mxu0 0.0
    %97 = vmatpush.msra.mxu0 0.0
    %98 = vmatpush.msra.mxu0 %v81
    %99 = vmatmul.f32.gmra.mxu0 %v68
    %v100 = vpop.f32.mrf.mxu0
    %v101 = vadd.f32 %v49, %v100
    %102 = vmatmul.f32.gmra.mxu0 %v71
    %v103 = vpop.f32.mrf.mxu0
    %v104 = vadd.f32 %v54, %v103
    %105 = vmatmul.f32.gmra.mxu0 %v74
    %v106 = vpop.f32.mrf.mxu0
    %v107 = vadd.f32 %v59, %v106
    %108 = vmatmul.f32.gmra.mxu0 %v77
    %v109 = vpop.f32.mrf.mxu0
    %v110 = vadd.f32 %v64, %v109
    %111 = vdwg.mxu0
    %v112 = vtanh.pop %v101
    %v113 = vtanh.pop %v104
    %v114 = vtanh.pop %v107
    %v115 = vtanh.pop %v110
    %117 = vset.pattern.permute.xlu0 0
    %118 = vperm.xlu0 %117, %v39
    %v119 = vpop.permute.xlu0 %118
    %122 = vset.pattern.permute.xlu0 0
    %123 = vperm.xlu0 %122, %v40
    %v124 = vpop.permute.xlu0 %123
    %127 = vset.pattern.permute.xlu0 0
    %128 = vperm.xlu0 %127, %v41
    %v129 = vpop.permute.xlu0 %128
    %132 = vset.pattern.permute.xlu0 0
    %133 = vperm.xlu0 %132, %v42
    %v134 = vpop.permute.xlu0 %133
    %vm136 = vcmask 261120
    %v138 = vsel %vm136, %v35, 0
    %v141 = vsel %vm136, %v36, 0
    %v144 = vsel %vm136, %v37, 0
    %v147 = vsel %vm136, %v38, 0
    %149 = vmatpush.msra.mxu0 0.0
    %150 = vmatpush.msra.mxu0 0.0
    %151 = vmatpush.msra.mxu0 0.0
    %152 = vmatpush.msra.mxu0 0.0
    %153 = vmatpush.msra.mxu0 0.0
    %154 = vmatpush.msra.mxu0 0.0
    %155 = vmatpush.msra.mxu0 0.0
    %156 = vmatpush.msra.mxu0 0.0
    %157 = vmatpush.msra.mxu0 0.0
    %158 = vmatpush.msra.mxu0 0.0
    %159 = vmatpush.msra.mxu0 0.0
    %160 = vmatpush.msra.mxu0 0.0
    %161 = vmatpush.msra.mxu0 %v115
    %162 = vmatpush.msra.mxu0 %v114
    %163 = vmatpush.msra.mxu0 %v113
    %164 = vmatpush.msra.mxu0 %v112
    %165 = vmatmul.f32.gmra.mxu0 %v138
    %v166 = vpop.f32.mrf.mxu0
    %v167 = vadd.f32 %v119, %v166
    %168 = vmatmul.f32.gmra.mxu0 %v141
    %v169 = vpop.f32.mrf.mxu0
    %v170 = vadd.f32 %v124, %v169
    %171 = vmatmul.f32.gmra.mxu0 %v144
    %v172 = vpop.f32.mrf.mxu0
    %v173 = vadd.f32 %v129, %v172
    %174 = vmatmul.f32.gmra.mxu0 %v147
    %v175 = vpop.f32.mrf.mxu0
    %v176 = vadd.f32 %v134, %v175
    %177 = vdwg.mxu0
    %v178 = vtanh.pop %v167
    %v179 = vtanh.pop %v170
    %v180 = vtanh.pop %v173
    %v181 = vtanh.pop %v176
    %183 = vset.pattern.permute.xlu0 0
    %184 = vperm.xlu0 %183, %v44
    %v185 = vpop.permute.xlu0 %184
    %v188 = vsel %vm136, %v43, 0
    %190 = vmatpush.msra.mxu0 0.0
    %191 = vmatpush.msra.mxu0 0.0
    %192 = vmatpush.msra.mxu0 0.0
    %193 = vmatpush.msra.mxu0 0.0
    %194 = vmatpush.msra.mxu0 0.0
    %195 = vmatpush.msra.mxu0 0.0
    %196 = vmatpush.msra.mxu0 0.0
    %197 = vmatpush.msra.mxu0 0.0
    %198 = vmatpush.msra.mxu0 0.0
    %199 = vmatpush.msra.mxu0 0.0
    %200 = vmatpush.msra.mxu0 0.0
    %201 = vmatpush.msra.mxu0 0.0
    %202 = vmatpush.msra.mxu0 %v181
    %203 = vmatpush.msra.mxu0 %v180
    %204 = vmatpush.msra.mxu0 %v179
    %205 = vmatpush.msra.mxu0 %v178
    %206 = vmatmul.f32.gmra.mxu0 %v188
    %v207 = vpop.f32.mrf.mxu0
    %v208 = vadd.f32 %v185, %v207
    %209 = vdwg.mxu0
    %210 = vst [vmem:[#allocation2] sm:$0x3f] %v208
    // Predicated region
    $region30: #{tpu_custom_call.1} parent=1 // pred_check
      _
    $region31: #{tpu_custom_call.1} parent=1 // pred_check_branch
      %212 = sbr.rel (0) target = $region33
    $region32: #{tpu_custom_call.1} parent=1 // pred_region
      %214 = vsyncadd [#allocation3], 0
      %s216 = sshll.u32 [#allocation2], 4
      %s217 = int_to_ptr.vmem [resolvable:$true] %s216
      %s218 = sshll.u32 %s7, 4
      %s219 = int_to_ptr.hbm [resolvable:$true] %s218
      %221 = dma.vmem_to_hbm [thread:$0]  %s217, 128, %s219, [#allocation3]
    $region33: #{tpu_custom_call.1} parent=1 // pred_fallthru
      _
    // Predicated region
    $region34: #{tpu_custom_call.1} parent=1 // pred_check
      _
    $region35: #{tpu_custom_call.1} parent=1 // pred_check_branch
      %223 = sbr.rel (0) target = $region37
    $region36: #{tpu_custom_call.1} parent=1 // pred_region
      %225 = dma.done [#allocation3], 128
    $region37: #{tpu_custom_call.1} parent=1 // pred_fallthru
      _
    %226 = vsyncpa [#allocation3], 1

</llo_original>
